<compile_context>
chip_gen: v6e
topology: v6e:2x2x1
jax: 0.10.0
libtpu: 0.0.40
codegen_flags: <defaults>
</compile_context>

<pallas_src>
import functools

import jax
import jax.numpy as jnp
from jax.experimental import pallas as pl
from jax.experimental.pallas import tpu as pltpu


# --------------------------------------------------------------------------
# Kernels
# --------------------------------------------------------------------------
def _psn_lane_kernel(w_ref, b_ref, x_ref, o_ref):
    """Case A: one batch element, one lane block.

    w_ref: (T, T)   weight (resident across the grid)
    b_ref: (T, 1)   bias column
    x_ref: (T, tm)  input lane-block
    o_ref: (T, tm)  output spike lane-block
    """
    h = jnp.dot(w_ref[...], x_ref[...], preferred_element_type=jnp.float32)
    h = h + b_ref[...]                       # broadcast (T,1) over lanes
    o_ref[...] = (h >= 0.0).astype(o_ref.dtype)   # heaviside forward


def _psn_bfold_kernel(w_ref, b_ref, x_ref, o_ref, *, nb):
    """Case B: nb batch elements folded into one contiguous block.

    w_ref: (T, T)
    b_ref: (T, 1)
    x_ref: (nb, T, M)
    o_ref: (nb, T, M)

    Static loop over the nb rows keeps every matmul a plain 2-D MXU dot
    (no rank-3 dot_general, no transposes) and keeps flops minimal; nb is
    capped in the wrapper so the unrolled body stays small.
    """
    w = w_ref[...]
    bcol = b_ref[...]
    for i in range(nb):
        h = jnp.dot(w, x_ref[i], preferred_element_type=jnp.float32) + bcol
        o_ref[i] = (h >= 0.0).astype(o_ref.dtype)


# --------------------------------------------------------------------------
# Wrapper
# --------------------------------------------------------------------------
def _round_down_128(x: int) -> int:
    return max(128, (x // 128) * 128)


def _round_up_128(x: int) -> int:
    return ((x + 127) // 128) * 128


def psn_forward(x_seq: jax.Array, weight: jax.Array, bias: jax.Array,
                *, target_block_bytes: int = 2 << 20) -> jax.Array:
    """PSN forward. x_seq: (B, T, *feature_dims); weight: (T, T); bias: (T,)."""
    B, T = x_seq.shape[0], x_seq.shape[1]
    feature_dims = x_seq.shape[2:]
    M = 1
    for d in feature_dims:
        M *= d
    itemsize = x_seq.dtype.itemsize

    # Free (no-copy) reshape: trailing feature dims collapse to one lane axis.
    x3d = x_seq.reshape(B, T, M)
    bias_col = bias.reshape(T, 1)

    cost = pl.CostEstimate(
        flops=2 * T * T * B * M,
        transcendentals=0,
        bytes_accessed=(2 * B * T * M + T * T + T) * itemsize,
    )

    # Lane-block width that makes one x block ~target_block_bytes.
    target_tm = _round_down_128(max(128, target_block_bytes // (T * itemsize)))

    lane_split = M > target_tm
    if (not lane_split) and B == 1 and M >= 256:
        # Single-batch, small-M: split lanes in two blocks so both v7x
        # TensorCores get work (no-op perf-wise on v5e/v6e).
        target_tm = _round_up_128(pl.cdiv(M, 2))
        lane_split = True

    if lane_split:
        # ---------------- Case A: lane-split ----------------
        tm = min(target_tm, _round_down_128(M))
        grid = (B, pl.cdiv(M, tm))           # >= 2 lane blocks by construction
        spike3d = pl.pallas_call(
            _psn_lane_kernel,
            out_shape=jax.ShapeDtypeStruct((B, T, M), x_seq.dtype),
            grid_spec=pltpu.PrefetchScalarGridSpec(
                num_scalar_prefetch=0,
                grid=grid,
                in_specs=[
                    pl.BlockSpec((T, T), lambda b, j: (0, 0)),      # weight, resident
                    pl.BlockSpec((T, 1), lambda b, j: (0, 0)),      # bias column
                    pl.BlockSpec((None, T, tm), lambda b, j: (b, 0, j)),
                ],
                out_specs=pl.BlockSpec((None, T, tm), lambda b, j: (b, 0, j)),
            ),
            compiler_params=pltpu.CompilerParams(
                dimension_semantics=("parallel", "parallel")),
            cost_estimate=cost,
        )(weight, bias_col, x3d)
    else:
        # ---------------- Case B: batch-fold ----------------
        # Fold several batch elements into one contiguous block; cap nb so the
        # unrolled kernel body and VMEM footprint stay small.
        nb = max(1, min(B, 32, target_block_bytes // max(1, T * M * itemsize)))
        if pl.cdiv(B, nb) < 2 and B >= 2:
            nb = pl.cdiv(B, 2)               # keep >=2 grid steps (v7x dual-TC)
        grid = (pl.cdiv(B, nb),)
        spike3d = pl.pallas_call(
            functools.partial(_psn_bfold_kernel, nb=nb),
            out_shape=jax.ShapeDtypeStruct((B, T, M), x_seq.dtype),
            grid_spec=pltpu.PrefetchScalarGridSpec(
                num_scalar_prefetch=0,
                grid=grid,
                in_specs=[
                    pl.BlockSpec((T, T), lambda i: (0, 0)),         # weight, resident
                    pl.BlockSpec((T, 1), lambda i: (0, 0)),         # bias column
                    pl.BlockSpec((nb, T, M), lambda i: (i, 0, 0)),  # contiguous slab
                ],
                out_specs=pl.BlockSpec((nb, T, M), lambda i: (i, 0, 0)),
            ),
            compiler_params=pltpu.CompilerParams(
                dimension_semantics=("parallel",)),
            cost_estimate=cost,
        )(weight, bias_col, x3d)

    # Free reshape back to (B, T, *feature_dims) — no transpose needed.
    return spike3d.reshape((B, T) + feature_dims)


def init_psn_params(T: int, key: jax.Array):
    """Deterministic init matching nn.Linear(T, T) + constant bias -1."""
    bound = 1.0 / (T ** 0.5)
    weight = jax.random.uniform(key, (T, T), jnp.float32, -bound, bound)
    bias = jnp.full((T,), -1.0, jnp.float32)    # nn.init.constant_(bias, -1)
    return weight, bias


# --------------------------------------------------------------------------
# Self-test
# --------------------------------------------------------------------------
def _psn_reference(x_seq, weight, bias):
    """Pure-JAX reference of the original PyTorch semantics."""
    B, T = x_seq.shape[0], x_seq.shape[1]
    fd = x_seq.shape[2:]
    x2d = jnp.moveaxis(x_seq, 1, 0).reshape(T, -1)
    h = weight @ x2d + bias[:, None]
    s = (h >= 0).astype(x_seq.dtype).reshape((T, B) + fd)
    return jnp.moveaxis(s, 0, 1)


if __name__ == "__main__":
    key = jax.random.PRNGKey(0)
    kx, kw, kx2 = jax.random.split(key, 3)

    # Small shapes consistent with seq-CIFAR usage: (B, T, C, H, W)
    B, T, C, H, W = 2, 8, 4, 16, 16
    x_seq = jax.random.normal(kx, (B, T, C, H, W), jnp.float32)
    weight, bias = init_psn_params(T, kw)

    # Default path (Case B: batch-fold, M = 1024 < target lane block).
    spike = jax.block_until_ready(jax.jit(psn_forward)(x_seq, weight, bias))
    assert spike.shape == (B, T, C, H, W)
    assert bool(jnp.all(spike == _psn_reference(x_seq, weight, bias)))

    # Forced lane-split path (Case A): shrink the block target so M > tm.
    fwd_lane = jax.jit(functools.partial(psn_forward, target_block_bytes=4096))
    spike_a = jax.block_until_ready(fwd_lane(x_seq, weight, bias))
    assert bool(jnp.all(spike_a == spike))

    # Odd batch (B=3): exercises the partial (nb, T, M) block + OOB write mask.
    x3 = jax.random.normal(kx2, (3, T, C, H, W), jnp.float32)
    spike3 = jax.block_until_ready(jax.jit(psn_forward)(x3, weight, bias))
    assert bool(jnp.all(spike3 == _psn_reference(x3, weight, bias)))

    print("KERNEL_OK")
</pallas_src>

<mosaic_0001>
module attributes {stable_mosaic.version = 11 : i64} {
  func.func @_psn_bfold_kernel(%arg0: i32, %arg1: memref<8x8xf32, #tpu.memory_space<vmem>>, %arg2: memref<8x1xf32, #tpu.memory_space<vmem>>, %arg3: memref<1x8x1024xf32, #tpu.memory_space<vmem>>, %arg4: memref<1x8x1024xf32, #tpu.memory_space<vmem>>) attributes {dimension_semantics = [#tpu.dimension_semantics<parallel>], iteration_bounds = array<i64: 2>, scalar_prefetch = 0 : i64, scratch_operands = 0 : i64, tpu.core_type = #tpu.core_type<tc>, window_params = [{pipeline_mode = #tpu.pipeline_mode<synchronous>, transform_indices = @transform_0, window_bounds = array<i64: 8, 8>}, {pipeline_mode = #tpu.pipeline_mode<synchronous>, transform_indices = @transform_1, window_bounds = array<i64: 8, 1>}, {transform_indices = @transform_2, window_bounds = array<i64: 1, 8, 1024>}, {transform_indices = @transform_3, window_bounds = array<i64: 1, 8, 1024>}]} {
    %c0 = arith.constant 0 : index
    %c0_0 = arith.constant 0 : index
    %0 = vector.load %arg1[%c0, %c0_0] : memref<8x8xf32, #tpu.memory_space<vmem>>, vector<8x8xf32>
    %c0_1 = arith.constant 0 : index
    %c0_2 = arith.constant 0 : index
    %1 = vector.load %arg2[%c0_1, %c0_2] : memref<8x1xf32, #tpu.memory_space<vmem>>, vector<8x1xf32>
    %c0_3 = arith.constant 0 : index
    %c0_4 = arith.constant 0 : index
    %c0_5 = arith.constant 0 : index
    %2 = vector.load %arg3[%c0_3, %c0_4, %c0_5] : memref<1x8x1024xf32, #tpu.memory_space<vmem>>, vector<1x8x1024xf32>
    %3 = vector.shape_cast %2 : vector<1x8x1024xf32> to vector<8x1024xf32>
    %cst = arith.constant dense<0.000000e+00> : vector<8x1024xf32>
    %4 = tpu.matmul %0, %3, %cst {dimension_numbers = #tpu.dot_dimension_numbers<[1], [0], [0], [1], [0, 0, 1, 1], [], []>} : vector<8x8xf32>, vector<8x1024xf32>, vector<8x1024xf32> -> vector<8x1024xf32>
    %5 = vector.broadcast %1 : vector<8x1xf32> to vector<8x1024xf32>
    %6 = arith.addf %4, %5 : vector<8x1024xf32>
    %cst_6 = arith.constant 0.000000e+00 : f32
    %7 = vector.broadcast %cst_6 : f32 to vector<8x1024xf32>
    %8 = arith.cmpf oge, %6, %7 : vector<8x1024xf32>
    %9 = arith.extui %8 : vector<8x1024xi1> to vector<8x1024xi32>
    %10 = arith.sitofp %9 : vector<8x1024xi32> to vector<8x1024xf32>
    %c0_7 = arith.constant 0 : index
    %c0_8 = arith.constant 0 : index
    %c0_9 = arith.constant 0 : index
    %11 = vector.load %arg4[%c0_7, %c0_8, %c0_9] : memref<1x8x1024xf32, #tpu.memory_space<vmem>>, vector<1x8x1024xf32>
    %12 = vector.shape_cast %11 : vector<1x8x1024xf32> to vector<8x1024xf32>
    %13 = vector.shape_cast %10 : vector<8x1024xf32> to vector<1x8x1024xf32>
    tpu.vector_store %arg4[%c0_7, %c0_8, %c0_9], %13 {strides = array<i32>} : memref<1x8x1024xf32, #tpu.memory_space<vmem>>, vector<1x8x1024xf32>,
    return
  }
  func.func @transform_0(%arg0: i32) -> (i32, i32) {
    %c0_i32 = arith.constant 0 : i32
    %c0_i32_0 = arith.constant 0 : i32
    %c0_i32_1 = arith.constant 0 : i32
    return %c0_i32, %c0_i32_0 : i32, i32
  }
  func.func @transform_1(%arg0: i32) -> (i32, i32) {
    %c0_i32 = arith.constant 0 : i32
    %c0_i32_0 = arith.constant 0 : i32
    %c0_i32_1 = arith.constant 0 : i32
    return %c0_i32, %c0_i32_0 : i32, i32
  }
  func.func @transform_2(%arg0: i32) -> (i32, i32, i32) {
    %c0_i32 = arith.constant 0 : i32
    %c0_i32_0 = arith.constant 0 : i32
    %c0_i32_1 = arith.constant 0 : i32
    return %arg0, %c0_i32, %c0_i32_0 : i32, i32, i32
  }
  func.func @transform_3(%arg0: i32) -> (i32, i32, i32) {
    %c0_i32 = arith.constant 0 : i32
    %c0_i32_0 = arith.constant 0 : i32
    %c0_i32_1 = arith.constant 0 : i32
    return %arg0, %c0_i32, %c0_i32_0 : i32, i32, i32
  }
}

</mosaic_0001>

<llo_original>
// kernel: psn_forward.1
$region0: #{psn_forward.1}
  #allocation0 [shape = 'u32[]', space=smem, size = 0x4, offset = 0x4, fixed_abs, tag = 'smem constant byte address 0x4 - core index']
  #allocation1 [shape = 'u32[144,128]{1,0:T(1,128)}', space=vmem, size = 0x12000, scoped, tag = 'internal scratch']
  %s0 = inlined_call_operand.vmem [shape: f32[8,8], index: 0, kind: input, shape index: {}]
  %s1 = inlined_call_operand.vmem [shape: f32[8,1], index: 1, kind: input, shape index: {}]
  %s2 = inlined_call_operand.vmem [shape: f32[2,8,1024], index: 2, kind: input, shape index: {}]
  %s3 = inlined_call_operand.vmem [shape: f32[2,8,1024], index: 3, kind: output, shape index: {}]
  %s4 = sld [smem:[#allocation0]]
  $region45: #{psn_forward.1} parent=0
    _
  %s6 = ssub.s32 1, %s4
  %s7 = scalar_select 0, %s6, %s4
  loop: start=0, step=1, limit=4
  $region2: #{psn_forward.1} parent=0 // loop_pre_header
    _
  $region3: #{psn_forward.1} parent=0 // loop_header
    %s9 = sphi 0, %s13
    %p10 = scmp.ge.s32.totalorder %s9, 4
    %s17 = sphi 0, %s17
    %s19 = sphi 0, %s17
    %s20 = sphi 0, %s19
    %s34 = sphi 0, %s20
    %s38 = sphi 0, %s38
    %s40 = sphi 0, %s38
    %s41 = sphi 0, %s40
    %s55 = sphi 0, %s41
    %s61 = sphi 0, %s63
    %s64 = sphi 0, %s61
    %s65 = sphi 0, %s64
    %s81 = sphi 0, %s65
    %s87 = sphi 0, %s89
    %s90 = sphi 0, %s87
    %s91 = sphi 0, %s90
    %s107 = sphi 0, %s91
  $region4: #{psn_forward.1} parent=0 // loop_header_branch
    %12 = sbr.rel (%p10) target = $region8
  $region5: #{psn_forward.1} parent=0 // loop_body
    %s14 = ssub.s32 %s9, 1
    %s15 = ssub.s32 %s9, 2
    %s16 = sadd.s32 %s9, 1
    %s18 = sadd.s32 %s17, 1
    %p21 = scmp.eq.s32.totalorder %s9, 1
    %p22 = scmp.ne.s32.totalorder %s17, %s19
    %p23 = scmp.eq.s32.totalorder %s9, 0
    %p24 = por %p22, %p23
    %p25 = scmp.ne.s32.totalorder %s17, %s19
    %p26 = scmp.eq.s32.totalorder %s14, 1
    %p27 = por %p25, %p26
    %p28 = scmp.ne.s32.totalorder %s19, %s20
    %p29 = scmp.eq.s32.totalorder %s14, 0
    %p30 = por %p28, %p29
    %p31 = scmp.ne.s32.totalorder %s19, %s20
    %p32 = scmp.eq.s32.totalorder %s15, 1
    %p33 = por %p31, %p32
    %p35 = scmp.ne.s32.totalorder %s20, %s34
    %p36 = scmp.eq.s32.totalorder %s15, 0
    %p37 = por %p35, %p36
    %s39 = sadd.s32 %s38, 1
    %p42 = scmp.eq.s32.totalorder %s9, 1
    %p43 = scmp.ne.s32.totalorder %s38, %s40
    %p44 = scmp.eq.s32.totalorder %s9, 0
    %p45 = por %p43, %p44
    %p46 = scmp.ne.s32.totalorder %s38, %s40
    %p47 = scmp.eq.s32.totalorder %s14, 1
    %p48 = por %p46, %p47
    %p49 = scmp.ne.s32.totalorder %s40, %s41
    %p50 = scmp.eq.s32.totalorder %s14, 0
    %p51 = por %p49, %p50
    %p52 = scmp.ne.s32.totalorder %s40, %s41
    %p53 = scmp.eq.s32.totalorder %s15, 1
    %p54 = por %p52, %p53
    %p56 = scmp.ne.s32.totalorder %s41, %s55
    %p57 = scmp.eq.s32.totalorder %s15, 0
    %p58 = por %p56, %p57
    %s59 = ssub.s32 %s9, %s16
    %p60 = scmp.eq.s32.totalorder %s59, 0
    %s62 = sadd.s32 %s61, 1
    %s63 = scalar_select %p60, %s61, %s62
    %p66 = pneg %p60
    %p67 = scmp.eq.s32.totalorder %s9, 1
    %p68 = por %p66, %p67
    %p69 = scmp.ne.s32.totalorder %s61, %s64
    %p70 = scmp.eq.s32.totalorder %s9, 0
    %p71 = por %p69, %p70
    %p72 = scmp.ne.s32.totalorder %s61, %s64
    %p73 = scmp.eq.s32.totalorder %s14, 1
    %p74 = por %p72, %p73
    %p75 = scmp.ne.s32.totalorder %s64, %s65
    %p76 = scmp.eq.s32.totalorder %s14, 0
    %p77 = por %p75, %p76
    %p78 = scmp.ne.s32.totalorder %s64, %s65
    %p79 = scmp.eq.s32.totalorder %s15, 1
    %p80 = por %p78, %p79
    %p82 = scmp.ne.s32.totalorder %s65, %s81
    %p83 = scmp.eq.s32.totalorder %s15, 0
    %p84 = por %p82, %p83
    %s85 = ssub.s32 %s9, %s16
    %p86 = scmp.eq.s32.totalorder %s85, 0
    %s88 = sadd.s32 %s87, 1
    %s89 = scalar_select %p86, %s87, %s88
    %p92 = pneg %p86
    %p93 = scmp.eq.s32.totalorder %s9, 1
    %p94 = por %p92, %p93
    %p95 = scmp.ne.s32.totalorder %s87, %s90
    %p96 = scmp.eq.s32.totalorder %s9, 0
    %p97 = por %p95, %p96
    %p98 = scmp.ne.s32.totalorder %s87, %s90
    %p99 = scmp.eq.s32.totalorder %s14, 1
    %p100 = por %p98, %p99
    %p101 = scmp.ne.s32.totalorder %s90, %s91
    %p102 = scmp.eq.s32.totalorder %s14, 0
    %p103 = por %p101, %p102
    %p104 = scmp.ne.s32.totalorder %s90, %s91
    %p105 = scmp.eq.s32.totalorder %s15, 1
    %p106 = por %p104, %p105
    %p108 = scmp.ne.s32.totalorder %s91, %s107
    %p109 = scmp.eq.s32.totalorder %s15, 0
    %p110 = por %p108, %p109
    %p111 = scmp.le.s32.totalorder 1, %s9
    %p112 = scmp.lt.s32.totalorder %s9, 3
    %p113 = pnand %p111, %p112
    %p114 = pneg %p113
    // Predicated region
    $region9: #{psn_forward.1} parent=5 // pred_check
      _
    $region10: #{psn_forward.1} parent=5 // pred_check_branch
      %116 = sbr.rel (%p113) target = $region12
    $region11: #{psn_forward.1} parent=5 // pred_region
      %s117 = ssub.s32 %s9, 1
      // Predicated region
      $region13: #{psn_forward.1} parent=11 // pred_check
        %p118 = pneg %p30
      $region14: #{psn_forward.1} parent=11 // pred_check_branch
        %120 = sbr.rel (%p118) target = $region16
      $region15: #{psn_forward.1} parent=11 // pred_region
        _
      $region16: #{psn_forward.1} parent=11 // pred_fallthru
        _
      // Predicated region
      $region17: #{psn_forward.1} parent=11 // pred_check
        %p121 = pneg %p51
      $region18: #{psn_forward.1} parent=11 // pred_check_branch
        %123 = sbr.rel (%p121) target = $region20
      $region19: #{psn_forward.1} parent=11 // pred_region
        _
      $region20: #{psn_forward.1} parent=11 // pred_fallthru
        _
    $region12: #{psn_forward.1} parent=5 // pred_fallthru
      _
    %p124 = scmp.lt.s32.totalorder %s9, 2
    // Predicated region
    $region21: #{psn_forward.1} parent=5 // pred_check
      %p125 = pneg %p124
    $region22: #{psn_forward.1} parent=5 // pred_check_branch
      %127 = sbr.rel (%p125) target = $region24
    $region23: #{psn_forward.1} parent=5 // pred_region
      // Predicated region
      $region25: #{psn_forward.1} parent=23 // pred_check
        %p128 = pneg %p71
      $region26: #{psn_forward.1} parent=23 // pred_check_branch
        %130 = sbr.rel (%p128) target = $region28
      $region27: #{psn_forward.1} parent=23 // pred_region
        %p131 = scmp.lt.s32.totalorder %s9, 1
        %s132 = scalar_select %p131, %s9, 1
        %s133 = smul.addr %s132, 8
        %s134 = smul.addr %s133, 8
        %s135 = scalar_lea.vmem %s2, %s134
      $region28: #{psn_forward.1} parent=23 // pred_fallthru
        _
    $region24: #{psn_forward.1} parent=5 // pred_fallthru
      _
    %p136 = scmp.le.s32.totalorder 1, %s9
    %p137 = scmp.lt.s32.totalorder %s9, 3
    %p138 = pnand %p136, %p137
    %p139 = pneg %p138
    // Predicated region
    $region29: #{psn_forward.1} parent=5 // pred_check
      _
    $region30: #{psn_forward.1} parent=5 // pred_check_branch
      %141 = sbr.rel (%p138) target = $region32
    $region31: #{psn_forward.1} parent=5 // pred_region
      %s142 = ssub.s32 %s9, 1
      %p143 = pneg %p30
      %p144 = pneg %p27
      %p145 = pneg %p51
      %p146 = pneg %p48
      %p147 = scmp.lt.s32.totalorder %s14, 1
      %s148 = scalar_select %p147, %s14, 1
      %s149 = smul.addr %s148, 8
      %s150 = smul.addr %s149, 8
      %s151 = scalar_lea.vmem %s2, %s150
      %p152 = pneg %p77
      %p153 = pneg %p74
      %p154 = pneg %p103
      %p155 = pneg %p100
      %p156 = scmp.lt.s32.totalorder %s14, 1
      %s157 = scalar_select %p156, %s14, 1
      %s158 = smul.addr %s157, 8
      %s159 = smul.addr %s158, 8
      %s160 = scalar_lea.vmem %s3, %s159
      %p161 = scmp.lt.s32.totalorder %s14, 1
      %s162 = scalar_select %p161, %s14, 1
      %s163 = smul.addr %s162, 8
      %s164 = smul.addr %s163, 8
      %s165 = scalar_lea.vmem %s2, %s164
      %p166 = scmp.lt.s32.totalorder %s14, 1
      %s167 = scalar_select %p166, %s14, 1
      %s168 = smul.addr %s167, 8
      %s169 = smul.addr %s168, 8
      %s170 = scalar_lea.vmem %s3, %s169
      %v171 = vld [vmem:[%s0] sm:$0xff]
      %v172 = vld [vmem:[%s1] sm:$0xff]
      %v173 = vld [vmem:[%s165] sm:$0xff]
      %v174 = vld [vmem:[%s165 + $0x8] sm:$0xff]
      %v175 = vld [vmem:[%s165 + $0x10] sm:$0xff]
      %v176 = vld [vmem:[%s165 + $0x18] sm:$0xff]
      %v177 = vld [vmem:[%s165 + $0x20] sm:$0xff]
      %v178 = vld [vmem:[%s165 + $0x28] sm:$0xff]
      %v179 = vld [vmem:[%s165 + $0x30] sm:$0xff]
      %v180 = vld [vmem:[%s165 + $0x38] sm:$0xff]
      %182 = vset.pattern.permute.xlu0 0
      %183 = vperm.xlu0 %182, %v172
      %v184 = vpop.permute.xlu0 %183
      %vm186 = vcmask 64512
      %v188 = vsel %vm186, %v171, 0
      %190 = vmatprep.subr.mxu0 0.0
      %191 = vmatpush1.msra.mxu0 0.0
      %192 = vmatprep.subr.mxu0 0.0
      %193 = vmatpush1.msra.mxu0 0.0
      %194 = vmatprep.subr.mxu0 0.0
      %195 = vmatpush1.msra.mxu0 0.0
      %196 = vmatprep.subr.mxu0 0.0
      %197 = vmatpush1.msra.mxu0 0.0
      %198 = vmatprep.subr.mxu0 0.0
      %199 = vmatpush1.msra.mxu0 0.0
      %200 = vmatprep.subr.mxu0 0.0
      %201 = vmatpush1.msra.mxu0 0.0
      %202 = vmatprep.subr.mxu0 0.0
      %203 = vmatpush1.msra.mxu0 0.0
      %204 = vmatprep.subr.mxu0 0.0
      %205 = vmatpush1.msra.mxu0 0.0
      %206 = vmatprep.subr.mxu0 0.0
      %207 = vmatpush1.msra.mxu0 0.0
      %208 = vmatprep.subr.mxu0 0.0
      %209 = vmatpush1.msra.mxu0 0.0
      %210 = vmatprep.subr.mxu0 0.0
      %211 = vmatpush1.msra.mxu0 0.0
      %212 = vmatprep.subr.mxu0 0.0
      %213 = vmatpush1.msra.mxu0 0.0
      %214 = vmatprep.subr.mxu0 0.0
      %215 = vmatpush1.msra.mxu0 0.0
      %216 = vmatprep.subr.mxu0 0.0
      %217 = vmatpush1.msra.mxu0 0.0
      %218 = vmatprep.subr.mxu0 0.0
      %219 = vmatpush1.msra.mxu0 0.0
      %220 = vmatprep.subr.mxu0 %v174
      %221 = vmatpush1.msra.mxu0 %v173
      %222 = vmatprep.subr.mxu0 0.0
      %223 = vmatpush2.msra.mxu0 0.0
      %224 = vmatprep.subr.mxu0 0.0
      %225 = vmatpush2.msra.mxu0 0.0
      %226 = vmatprep.subr.mxu0 0.0
      %227 = vmatpush2.msra.mxu0 0.0
      %228 = vmatprep.subr.mxu0 0.0
      %229 = vmatpush2.msra.mxu0 0.0
      %230 = vmatprep.subr.mxu0 0.0
      %231 = vmatpush2.msra.mxu0 0.0
      %232 = vmatprep.subr.mxu0 0.0
      %233 = vmatpush2.msra.mxu0 0.0
      %234 = vmatprep.subr.mxu0 0.0
      %235 = vmatpush2.msra.mxu0 0.0
      %236 = vmatprep.subr.mxu0 0.0
      %237 = vmatpush2.msra.mxu0 0.0
      %238 = vmatprep.subr.mxu0 0.0
      %239 = vmatpush2.msra.mxu0 0.0
      %240 = vmatprep.subr.mxu0 0.0
      %241 = vmatpush2.msra.mxu0 0.0
      %242 = vmatprep.subr.mxu0 0.0
      %243 = vmatpush2.msra.mxu0 0.0
      %244 = vmatprep.subr.mxu0 0.0
      %245 = vmatpush2.msra.mxu0 0.0
      %246 = vmatprep.subr.mxu0 0.0
      %247 = vmatpush2.msra.mxu0 0.0
      %248 = vmatprep.subr.mxu0 0.0
      %249 = vmatpush2.msra.mxu0 0.0
      %250 = vmatprep.subr.mxu0 0.0
      %251 = vmatpush2.msra.mxu0 0.0
      %252 = vmatprep.subr.mxu0 0.0
      %253 = vmatpush2.msra.mxu0 0.0
      %254 = vmatprep.mubr.f32.mxu0 0.0
      %255 = vmatmul.mubr.f32.gmra.mxu0 %v188
      %v256 = vpop.f32.mrf.mxu0
      %v257 = vadd.f32 %v184, %v256
      %v258 = vpop.f32.mrf.mxu0
      %v259 = vadd.f32 %v184, %v258
      %260 = vdwg.mxu0
      %261 = vmatprep.subr.mxu0 0.0
      %262 = vmatpush1.msra.mxu0 0.0
      %263 = vmatprep.subr.mxu0 0.0
      %264 = vmatpush1.msra.mxu0 0.0
      %265 = vmatprep.subr.mxu0 0.0
      %266 = vmatpush1.msra.mxu0 0.0
      %267 = vmatprep.subr.mxu0 0.0
      %268 = vmatpush1.msra.mxu0 0.0
      %269 = vmatprep.subr.mxu0 0.0
      %270 = vmatpush1.msra.mxu0 0.0
      %271 = vmatprep.subr.mxu0 0.0
      %272 = vmatpush1.msra.mxu0 0.0
      %273 = vmatprep.subr.mxu0 0.0
      %274 = vmatpush1.msra.mxu0 0.0
      %275 = vmatprep.subr.mxu0 0.0
      %276 = vmatpush1.msra.mxu0 0.0
      %277 = vmatprep.subr.mxu0 0.0
      %278 = vmatpush1.msra.mxu0 0.0
      %279 = vmatprep.subr.mxu0 0.0
      %280 = vmatpush1.msra.mxu0 0.0
      %281 = vmatprep.subr.mxu0 0.0
      %282 = vmatpush1.msra.mxu0 0.0
      %283 = vmatprep.subr.mxu0 0.0
      %284 = vmatpush1.msra.mxu0 0.0
      %285 = vmatprep.subr.mxu0 0.0
      %286 = vmatpush1.msra.mxu0 0.0
      %287 = vmatprep.subr.mxu0 0.0
      %288 = vmatpush1.msra.mxu0 0.0
      %289 = vmatprep.subr.mxu0 0.0
      %290 = vmatpush1.msra.mxu0 0.0
      %291 = vmatprep.subr.mxu0 %v176
      %292 = vmatpush1.msra.mxu0 %v175
      %293 = vmatprep.subr.mxu0 0.0
      %294 = vmatpush2.msra.mxu0 0.0
      %295 = vmatprep.subr.mxu0 0.0
      %296 = vmatpush2.msra.mxu0 0.0
      %297 = vmatprep.subr.mxu0 0.0
      %298 = vmatpush2.msra.mxu0 0.0
      %299 = vmatprep.subr.mxu0 0.0
      %300 = vmatpush2.msra.mxu0 0.0
      %301 = vmatprep.subr.mxu0 0.0
      %302 = vmatpush2.msra.mxu0 0.0
      %303 = vmatprep.subr.mxu0 0.0
      %304 = vmatpush2.msra.mxu0 0.0
      %305 = vmatprep.subr.mxu0 0.0
      %306 = vmatpush2.msra.mxu0 0.0
      %307 = vmatprep.subr.mxu0 0.0
      %308 = vmatpush2.msra.mxu0 0.0
      %309 = vmatprep.subr.mxu0 0.0
      %310 = vmatpush2.msra.mxu0 0.0
      %311 = vmatprep.subr.mxu0 0.0
      %312 = vmatpush2.msra.mxu0 0.0
      %313 = vmatprep.subr.mxu0 0.0
      %314 = vmatpush2.msra.mxu0 0.0
      %315 = vmatprep.subr.mxu0 0.0
      %316 = vmatpush2.msra.mxu0 0.0
      %317 = vmatprep.subr.mxu0 0.0
      %318 = vmatpush2.msra.mxu0 0.0
      %319 = vmatprep.subr.mxu0 0.0
      %320 = vmatpush2.msra.mxu0 0.0
      %321 = vmatprep.subr.mxu0 0.0
      %322 = vmatpush2.msra.mxu0 0.0
      %323 = vmatprep.subr.mxu0 0.0
      %324 = vmatpush2.msra.mxu0 0.0
      %325 = vmatprep.mubr.f32.mxu0 0.0
      %326 = vmatmul.mubr.f32.gmra.mxu0 %v188
      %v327 = vpop.f32.mrf.mxu0
      %v328 = vadd.f32 %v184, %v327
      %v329 = vpop.f32.mrf.mxu0
      %v330 = vadd.f32 %v184, %v329
      %331 = vdwg.mxu0
      %332 = vmatprep.subr.mxu0 0.0
      %333 = vmatpush1.msra.mxu0 0.0
      %334 = vmatprep.subr.mxu0 0.0
      %335 = vmatpush1.msra.mxu0 0.0
      %336 = vmatprep.subr.mxu0 0.0
      %337 = vmatpush1.msra.mxu0 0.0
      %338 = vmatprep.subr.mxu0 0.0
      %339 = vmatpush1.msra.mxu0 0.0
      %340 = vmatprep.subr.mxu0 0.0
      %341 = vmatpush1.msra.mxu0 0.0
      %342 = vmatprep.subr.mxu0 0.0
      %343 = vmatpush1.msra.mxu0 0.0
      %344 = vmatprep.subr.mxu0 0.0
      %345 = vmatpush1.msra.mxu0 0.0
      %346 = vmatprep.subr.mxu0 0.0
      %347 = vmatpush1.msra.mxu0 0.0
      %348 = vmatprep.subr.mxu0 0.0
      %349 = vmatpush1.msra.mxu0 0.0
      %350 = vmatprep.subr.mxu0 0.0
      %351 = vmatpush1.msra.mxu0 0.0
      %352 = vmatprep.subr.mxu0 0.0
      %353 = vmatpush1.msra.mxu0 0.0
      %354 = vmatprep.subr.mxu0 0.0
      %355 = vmatpush1.msra.mxu0 0.0
      %356 = vmatprep.subr.mxu0 0.0
      %357 = vmatpush1.msra.mxu0 0.0
      %358 = vmatprep.subr.mxu0 0.0
      %359 = vmatpush1.msra.mxu0 0.0
      %360 = vmatprep.subr.mxu0 0.0
      %361 = vmatpush1.msra.mxu0 0.0
      %362 = vmatprep.subr.mxu0 %v178
      %363 = vmatpush1.msra.mxu0 %v177
      %364 = vmatprep.subr.mxu0 0.0
      %365 = vmatpush2.msra.mxu0 0.0
      %366 = vmatprep.subr.mxu0 0.0
      %367 = vmatpush2.msra.mxu0 0.0
      %368 = vmatprep.subr.mxu0 0.0
      %369 = vmatpush2.msra.mxu0 0.0
      %370 = vmatprep.subr.mxu0 0.0
      %371 = vmatpush2.msra.mxu0 0.0
      %372 = vmatprep.subr.mxu0 0.0
      %373 = vmatpush2.msra.mxu0 0.0
      %374 = vmatprep.subr.mxu0 0.0
      %375 = vmatpush2.msra.mxu0 0.0
      %376 = vmatprep.subr.mxu0 0.0
      %377 = vmatpush2.msra.mxu0 0.0
      %378 = vmatprep.subr.mxu0 0.0
      %379 = vmatpush2.msra.mxu0 0.0
      %380 = vmatprep.subr.mxu0 0.0
      %381 = vmatpush2.msra.mxu0 0.0
      %382 = vmatprep.subr.mxu0 0.0
      %383 = vmatpush2.msra.mxu0 0.0
      %384 = vmatprep.subr.mxu0 0.0
      %385 = vmatpush2.msra.mxu0 0.0
      %386 = vmatprep.subr.mxu0 0.0
      %387 = vmatpush2.msra.mxu0 0.0
      %388 = vmatprep.subr.mxu0 0.0
      %389 = vmatpush2.msra.mxu0 0.0
      %390 = vmatprep.subr.mxu0 0.0
      %391 = vmatpush2.msra.mxu0 0.0
      %392 = vmatprep.subr.mxu0 0.0
      %393 = vmatpush2.msra.mxu0 0.0
      %394 = vmatprep.subr.mxu0 0.0
      %395 = vmatpush2.msra.mxu0 0.0
      %396 = vmatprep.mubr.f32.mxu0 0.0
      %397 = vmatmul.mubr.f32.gmra.mxu0 %v188
      %v398 = vpop.f32.mrf.mxu0
      %v399 = vadd.f32 %v184, %v398
      %v400 = vpop.f32.mrf.mxu0
      %v401 = vadd.f32 %v184, %v400
      %402 = vdwg.mxu0
      %403 = vmatprep.subr.mxu0 0.0
      %404 = vmatpush1.msra.mxu0 0.0
      %405 = vmatprep.subr.mxu0 0.0
      %406 = vmatpush1.msra.mxu0 0.0
      %407 = vmatprep.subr.mxu0 0.0
      %408 = vmatpush1.msra.mxu0 0.0
      %409 = vmatprep.subr.mxu0 0.0
      %410 = vmatpush1.msra.mxu0 0.0
      %411 = vmatprep.subr.mxu0 0.0
      %412 = vmatpush1.msra.mxu0 0.0
      %413 = vmatprep.subr.mxu0 0.0
      %414 = vmatpush1.msra.mxu0 0.0
      %415 = vmatprep.subr.mxu0 0.0
      %416 = vmatpush1.msra.mxu0 0.0
      %417 = vmatprep.subr.mxu0 0.0
      %418 = vmatpush1.msra.mxu0 0.0
      %419 = vmatprep.subr.mxu0 0.0
      %420 = vmatpush1.msra.mxu0 0.0
      %421 = vmatprep.subr.mxu0 0.0
      %422 = vmatpush1.msra.mxu0 0.0
      %423 = vmatprep.subr.mxu0 0.0
      %424 = vmatpush1.msra.mxu0 0.0
      %425 = vmatprep.subr.mxu0 0.0
      %426 = vmatpush1.msra.mxu0 0.0
      %427 = vmatprep.subr.mxu0 0.0
      %428 = vmatpush1.msra.mxu0 0.0
      %429 = vmatprep.subr.mxu0 0.0
      %430 = vmatpush1.msra.mxu0 0.0
      %431 = vmatprep.subr.mxu0 0.0
      %432 = vmatpush1.msra.mxu0 0.0
      %433 = vmatprep.subr.mxu0 %v180
      %434 = vmatpush1.msra.mxu0 %v179
      %435 = vmatprep.subr.mxu0 0.0
      %436 = vmatpush2.msra.mxu0 0.0
      %437 = vmatprep.subr.mxu0 0.0
      %438 = vmatpush2.msra.mxu0 0.0
      %439 = vmatprep.subr.mxu0 0.0
      %440 = vmatpush2.msra.mxu0 0.0
      %441 = vmatprep.subr.mxu0 0.0
      %442 = vmatpush2.msra.mxu0 0.0
      %443 = vmatprep.subr.mxu0 0.0
      %444 = vmatpush2.msra.mxu0 0.0
      %445 = vmatprep.subr.mxu0 0.0
      %446 = vmatpush2.msra.mxu0 0.0
      %447 = vmatprep.subr.mxu0 0.0
      %448 = vmatpush2.msra.mxu0 0.0
      %449 = vmatprep.subr.mxu0 0.0
      %450 = vmatpush2.msra.mxu0 0.0
      %451 = vmatprep.subr.mxu0 0.0
      %452 = vmatpush2.msra.mxu0 0.0
      %453 = vmatprep.subr.mxu0 0.0
      %454 = vmatpush2.msra.mxu0 0.0
      %455 = vmatprep.subr.mxu0 0.0
      %456 = vmatpush2.msra.mxu0 0.0
      %457 = vmatprep.subr.mxu0 0.0
      %458 = vmatpush2.msra.mxu0 0.0
      %459 = vmatprep.subr.mxu0 0.0
      %460 = vmatpush2.msra.mxu0 0.0
      %461 = vmatprep.subr.mxu0 0.0
      %462 = vmatpush2.msra.mxu0 0.0
      %463 = vmatprep.subr.mxu0 0.0
      %464 = vmatpush2.msra.mxu0 0.0
      %465 = vmatprep.subr.mxu0 0.0
      %466 = vmatpush2.msra.mxu0 0.0
      %467 = vmatprep.mubr.f32.mxu0 0.0
      %468 = vmatmul.mubr.f32.gmra.mxu0 %v188
      %v469 = vpop.f32.mrf.mxu0
      %v470 = vadd.f32 %v184, %v469
      %v471 = vpop.f32.mrf.mxu0
      %v472 = vadd.f32 %v184, %v471
      %473 = vdwg.mxu0
      %vm474 = vcmp.ge.f32.partialorder %v257, 0.0
      %vm475 = vcmp.ge.f32.partialorder %v259, 0.0
      %vm476 = vcmp.ge.f32.partialorder %v328, 0.0
      %vm477 = vcmp.ge.f32.partialorder %v330, 0.0
      %vm478 = vcmp.ge.f32.partialorder %v399, 0.0
      %vm479 = vcmp.ge.f32.partialorder %v401, 0.0
      %vm480 = vcmp.ge.f32.partialorder %v470, 0.0
      %vm481 = vcmp.ge.f32.partialorder %v472, 0.0
      %v482 = vsel %vm474, 1, 0
      %v483 = vsel %vm475, 1, 0
      %v484 = vsel %vm476, 1, 0
      %v485 = vsel %vm477, 1, 0
      %v486 = vsel %vm478, 1, 0
      %v487 = vsel %vm479, 1, 0
      %v488 = vsel %vm480, 1, 0
      %v489 = vsel %vm481, 1, 0
      %v490 = vcvt.s32.f32 %v482
      %v491 = vcvt.s32.f32 %v483
      %v492 = vcvt.s32.f32 %v484
      %v493 = vcvt.s32.f32 %v485
      %v494 = vcvt.s32.f32 %v486
      %v495 = vcvt.s32.f32 %v487
      %v496 = vcvt.s32.f32 %v488
      %v497 = vcvt.s32.f32 %v489
      %498 = vst [vmem:[%s170] sm:$0xff] %v490
      %499 = vst [vmem:[%s170 + $0x8] sm:$0xff] %v491
      %500 = vst [vmem:[%s170 + $0x10] sm:$0xff] %v492
      %501 = vst [vmem:[%s170 + $0x18] sm:$0xff] %v493
      %502 = vst [vmem:[%s170 + $0x20] sm:$0xff] %v494
      %503 = vst [vmem:[%s170 + $0x28] sm:$0xff] %v495
      %504 = vst [vmem:[%s170 + $0x30] sm:$0xff] %v496
      %505 = vst [vmem:[%s170 + $0x38] sm:$0xff] %v497
      %p506 = scmp.lt.s32.totalorder %s14, 1
      %s507 = scalar_select %p506, %s14, 1
      %s508 = smul.addr %s507, 8
      %s509 = smul.addr %s508, 8
      %s510 = scalar_lea.vmem %s3, %s509
      // Predicated region
      $region33: #{psn_forward.1} parent=31 // pred_check
        %p511 = pneg %p100
      $region34: #{psn_forward.1} parent=31 // pred_check_branch
        %513 = sbr.rel (%p511) target = $region36
      $region35: #{psn_forward.1} parent=31 // pred_region
        _
      $region36: #{psn_forward.1} parent=31 // pred_fallthru
        _
    $region32: #{psn_forward.1} parent=5 // pred_fallthru
      _
    %p514 = scmp.le.s32.totalorder 2, %s9
    // Predicated region
    $region37: #{psn_forward.1} parent=5 // pred_check
      %p515 = pneg %p514
    $region38: #{psn_forward.1} parent=5 // pred_check_branch
      %517 = sbr.rel (%p515) target = $region40
    $region39: #{psn_forward.1} parent=5 // pred_region
      %s518 = ssub.s32 %s9, 2
      // Predicated region
      $region41: #{psn_forward.1} parent=39 // pred_check
        %p519 = pneg %p106
      $region42: #{psn_forward.1} parent=39 // pred_check_branch
        %521 = sbr.rel (%p519) target = $region44
      $region43: #{psn_forward.1} parent=39 // pred_region
        %p522 = scmp.lt.s32.totalorder %s15, 1
        %s523 = scalar_select %p522, %s15, 1
        %s524 = smul.addr %s523, 8
        %s525 = smul.addr %s524, 8
        %s526 = scalar_lea.vmem %s3, %s525
      $region44: #{psn_forward.1} parent=39 // pred_fallthru
        _
    $region40: #{psn_forward.1} parent=5 // pred_fallthru
      _
  $region6: #{psn_forward.1} parent=0 // loop_footer
    %s13 = sadd.s32 1, %s9
  $region7: #{psn_forward.1} parent=0 // loop_footer_branch
    %8 = sbr.rel target = $region3
  $region8: #{psn_forward.1} parent=0 // loop_exit
    _

</llo_original>
